<compile_context>
chip_gen: v5e
topology: v5e:2x2
jax: 0.10.0
libtpu: 0.0.40
codegen_flags: <defaults>
</compile_context>

<pallas_src>
import math

import jax
import jax.numpy as jnp
from jax.experimental import pallas as pl
from jax.experimental.pallas import tpu as pltpu


def _pe_linear_kernel(x_ref, t_ref, e_ref, ph_ref, wx_ref, wpe_ref, b_ref, o_ref):
    # x_ref  : (TM, P*D)   packed input features (lane-dense)
    # t_ref  : (TM, P)     packed time stamps (one scalar per original row)
    # e_ref  : (P, P*D)    block "broadcast" matrix carrying div_term (f32)
    # ph_ref : (1, P*D)    phase row: 0 on sin lanes, pi/2 on cos lanes (f32)
    # wx_ref : (P*D, P*D)  block-diagonal x-part of the linear weight (matmul dtype)
    # wpe_ref: (P*D, P*D)  block-diagonal pe-part of the linear weight (matmul dtype)
    # b_ref  : (1, P*D)    bias, replicated per packed block (f32)

    # arg[r, p*D + k] = time[r*P + p] * div_term[k % (D/2)]  -- tiny MXU dot
    # (K = P), kept in f32 so pe retains full precision.
    arg = jnp.dot(t_ref[...].astype(jnp.float32), e_ref[...],
                  preferred_element_type=jnp.float32)            # (TM, PD)

    # One transcendental: sin on sin-lanes, sin(arg + pi/2) == cos on cos-lanes.
    pe = jnp.sin(arg + ph_ref[...])                              # (TM, PD) f32

    acc = jnp.dot(x_ref[...].astype(wx_ref.dtype), wx_ref[...],
                  preferred_element_type=jnp.float32)
    acc = acc + jnp.dot(pe.astype(wpe_ref.dtype), wpe_ref[...],
                        preferred_element_type=jnp.float32)
    o_ref[...] = (acc + b_ref[...]).astype(o_ref.dtype)


def positional_encoding_irregular(x, time, weight, bias, *, tm=None,
                                  matmul_dtype=jnp.bfloat16):
    """x: (B, L, S, d_model), time: (B, L, S).
    weight: (d_model, 2*d_model) torch nn.Linear layout, bias: (d_model,)."""
    B, L, S, D = x.shape
    assert D % 2 == 0
    N = B * L * S
    half = D // 2

    # ---- lane-dense packing factor (no padding: P must also divide N) -------
    P = 1
    if D <= 128 and 128 % D == 0:
        P = 128 // D                       # power of two since D | 128
        while P > 1 and N % P != 0:
            P //= 2
    Dp = P * D                             # packed feature width
    M = N // P                             # packed rows (exact, no pad)

    # ---- tile size: big row tiles; even tile count for v7x megacore ----------
    if tm is None:
        tm = 1024
        while tm > 128 and pl.cdiv(M, tm) < 2:
            tm //= 2
    if M <= tm:
        tm = M                             # single block: block dims == full dims
        grid_m = 1
    else:
        tm = max(8, (tm // 8) * 8)
        grid_m = pl.cdiv(M, tm)
        if grid_m > 1 and grid_m % 2 == 1:
            # Prefer an even number of tiles so v7x's two TensorCores balance.
            tm2 = max(8, ((pl.cdiv(M, grid_m + 1) + 7) // 8) * 8)
            if tm2 < M and pl.cdiv(M, tm2) % 2 == 0:
                tm, grid_m = tm2, pl.cdiv(M, tm2)

    # ---- glue: free reshapes only (no pad copies) ----------------------------
    xp = x.reshape(M, Dp)                  # row r holds original rows r*P..r*P+P-1
    tp = time.reshape(M, P).astype(jnp.float32)

    # ---- parameters (tiny; built once in the wrapper) -------------------------
    div_term = jnp.exp(
        jnp.arange(0.0, D, 2.0, dtype=jnp.float32) * (-(math.log(10000.0) / D)))
    div2 = jnp.concatenate([div_term, div_term])        # (D,) grouped [sin | cos]
    eyeP = jnp.eye(P, dtype=jnp.float32)
    e_mat = jnp.kron(eyeP, div2.reshape(1, D))          # (P, P*D), f32

    phase_block = jnp.concatenate(
        [jnp.zeros((half,), jnp.float32),
         jnp.full((half,), jnp.pi / 2, jnp.float32)])   # 0 on sin lanes, pi/2 on cos
    phase = jnp.tile(phase_block, P).reshape(1, Dp)

    # torch: out = inp @ W.T + b, W: (D, 2D). Split into x-part / pe-part, permute
    # pe columns into grouped [sin | cos] order, replicate block-diagonally.
    Wf = jnp.asarray(weight, jnp.float32)
    Bx = Wf[:, :D].T                                              # (D, D)
    Wpe = Wf[:, D:]
    Bpe = jnp.concatenate([Wpe[:, 0::2], Wpe[:, 1::2]], axis=1).T  # (D, D)
    wx_bd = jnp.kron(eyeP, Bx).astype(matmul_dtype)               # (P*D, P*D)
    wpe_bd = jnp.kron(eyeP, Bpe).astype(matmul_dtype)             # (P*D, P*D)
    b_bd = jnp.tile(jnp.asarray(bias, jnp.float32), P).reshape(1, Dp)

    xbytes = jnp.dtype(x.dtype).itemsize
    wbytes = jnp.dtype(matmul_dtype).itemsize
    cost = pl.CostEstimate(
        flops=2 * M * Dp * (2 * Dp + P),          # two big dots + tiny time@E dot
        transcendentals=M * Dp,                   # one sin per output element
        bytes_accessed=(M * Dp * xbytes           # x read
                        + M * Dp * xbytes         # out write
                        + M * P * 4               # time read
                        + 2 * Dp * Dp * wbytes    # resident weights
                        + (P + 2) * Dp * 4),      # e_mat, phase, bias
    )

    # ---- Pallas call -----------------------------------------------------------
    out_packed = pl.pallas_call(
        _pe_linear_kernel,
        out_shape=jax.ShapeDtypeStruct((M, Dp), x.dtype),
        grid=(grid_m,),
        in_specs=[
            pl.BlockSpec((tm, Dp), lambda i: (i, 0)),   # packed x rows
            pl.BlockSpec((tm, P), lambda i: (i, 0)),    # packed time rows
            pl.BlockSpec((P, Dp), lambda i: (0, 0)),    # div "broadcast" matrix
            pl.BlockSpec((1, Dp), lambda i: (0, 0)),    # phase row (resident)
            pl.BlockSpec((Dp, Dp), lambda i: (0, 0)),   # Wx block-diag (resident)
            pl.BlockSpec((Dp, Dp), lambda i: (0, 0)),   # Wpe block-diag (resident)
            pl.BlockSpec((1, Dp), lambda i: (0, 0)),    # bias (resident)
        ],
        out_specs=pl.BlockSpec((tm, Dp), lambda i: (i, 0)),
        compiler_params=pltpu.CompilerParams(
            dimension_semantics=("parallel",)),
        cost_estimate=cost,
    )(xp, tp, e_mat, phase, wx_bd, wpe_bd, b_bd)

    return out_packed.reshape(B, L, S, D)


def _reference(x, time, weight, bias):
    """Pure-JAX reference mirroring the torch forward (dropout = identity)."""
    B, L, S, D = x.shape
    xr = x.reshape(B * L, S, D)
    tr = time.reshape(B * L, S).astype(jnp.float32)
    div_term = jnp.exp(
        jnp.arange(0.0, D, 2.0, dtype=jnp.float32) * (-(math.log(10000.0) / D)))
    pos = tr[:, :, None]
    pe = jnp.zeros((B * L, S, D), jnp.float32)
    pe = pe.at[:, :, 0::2].set(jnp.sin(pos * div_term))
    pe = pe.at[:, :, 1::2].set(jnp.cos(pos * div_term))
    inp = jnp.concatenate([xr.astype(jnp.float32), pe], axis=-1)
    out = jnp.einsum("bsk,dk->bsd", inp, weight) + bias
    return out.reshape(B, L, S, D)


if __name__ == "__main__":
    master = jax.random.PRNGKey(0)
    shapes = [
        (2, 3, 8, 32),      # tiny: packed single-block path (block dims == array dims)
        (2, 5, 100, 32),    # larger: multi-tile path with a partial last block
    ]
    for idx, (B, L, S, D) in enumerate(shapes):
        kx, kt, kw, kb = jax.random.split(jax.random.fold_in(master, idx), 4)
        x = jax.random.normal(kx, (B, L, S, D), dtype=jnp.float32)
        time = jax.random.uniform(kt, (B, L, S), dtype=jnp.float32) * 10.0

        # Deterministic Linear(2D -> D) init (torch-style uniform bound 1/sqrt(fan_in)).
        bound = 1.0 / math.sqrt(2 * D)
        weight = jax.random.uniform(kw, (D, 2 * D), minval=-bound, maxval=bound,
                                    dtype=jnp.float32)
        bias = jax.random.uniform(kb, (D,), minval=-bound, maxval=bound,
                                  dtype=jnp.float32)

        ref = _reference(x, time, weight, bias)

        # f32 MXU-operand path: tight tolerance.
        out_f32 = jax.block_until_ready(
            positional_encoding_irregular(x, time, weight, bias,
                                          matmul_dtype=jnp.float32))
        assert out_f32.shape == (B, L, S, D)
        assert jnp.allclose(out_f32, ref, atol=1e-4, rtol=1e-4), \
            f"f32-path mismatch vs reference for shape {(B, L, S, D)}"

        # Default bf16 MXU-operand path: looser tolerance (bf16 mantissa).
        out_bf16 = jax.block_until_ready(
            positional_encoding_irregular(x, time, weight, bias))
        assert out_bf16.shape == (B, L, S, D)
        assert jnp.allclose(out_bf16, ref, atol=3e-2, rtol=3e-2), \
            f"bf16-path mismatch vs reference for shape {(B, L, S, D)}"

    print("KERNEL_OK")
</pallas_src>

<mosaic_0001>
module attributes {stable_mosaic.version = 11 : i64} {
  func.func @_pe_linear_kernel(%arg0: i32, %arg1: memref<12x128xf32, #tpu.memory_space<vmem>>, %arg2: memref<12x4xf32, #tpu.memory_space<vmem>>, %arg3: memref<4x128xf32, #tpu.memory_space<vmem>>, %arg4: memref<1x128xf32, #tpu.memory_space<vmem>>, %arg5: memref<128x128xf32, #tpu.memory_space<vmem>>, %arg6: memref<128x128xf32, #tpu.memory_space<vmem>>, %arg7: memref<1x128xf32, #tpu.memory_space<vmem>>, %arg8: memref<12x128xf32, #tpu.memory_space<vmem>>) attributes {dimension_semantics = [#tpu.dimension_semantics<parallel>], iteration_bounds = array<i64: 1>, scalar_prefetch = 0 : i64, scratch_operands = 0 : i64, tpu.core_type = #tpu.core_type<tc>, window_params = [{transform_indices = @transform_0, window_bounds = array<i64: 12, 128>}, {transform_indices = @transform_1, window_bounds = array<i64: 12, 4>}, {pipeline_mode = #tpu.pipeline_mode<synchronous>, transform_indices = @transform_2, window_bounds = array<i64: 4, 128>}, {pipeline_mode = #tpu.pipeline_mode<synchronous>, transform_indices = @transform_3, window_bounds = array<i64: 1, 128>}, {pipeline_mode = #tpu.pipeline_mode<synchronous>, transform_indices = @transform_4, window_bounds = array<i64: 128, 128>}, {pipeline_mode = #tpu.pipeline_mode<synchronous>, transform_indices = @transform_5, window_bounds = array<i64: 128, 128>}, {pipeline_mode = #tpu.pipeline_mode<synchronous>, transform_indices = @transform_6, window_bounds = array<i64: 1, 128>}, {transform_indices = @transform_7, window_bounds = array<i64: 12, 128>}]} {
    %c0 = arith.constant 0 : index
    %c0_0 = arith.constant 0 : index
    %0 = vector.load %arg2[%c0, %c0_0] : memref<12x4xf32, #tpu.memory_space<vmem>>, vector<12x4xf32>
    %c0_1 = arith.constant 0 : index
    %c0_2 = arith.constant 0 : index
    %1 = vector.load %arg3[%c0_1, %c0_2] : memref<4x128xf32, #tpu.memory_space<vmem>>, vector<4x128xf32>
    %cst = arith.constant dense<0.000000e+00> : vector<12x128xf32>
    %2 = tpu.matmul %0, %1, %cst {dimension_numbers = #tpu.dot_dimension_numbers<[1], [0], [0], [1], [0, 0, 1, 1], [], []>} : vector<12x4xf32>, vector<4x128xf32>, vector<12x128xf32> -> vector<12x128xf32>
    %c0_3 = arith.constant 0 : index
    %c0_4 = arith.constant 0 : index
    %3 = vector.load %arg4[%c0_3, %c0_4] : memref<1x128xf32, #tpu.memory_space<vmem>>, vector<1x128xf32>
    %4 = vector.broadcast %3 : vector<1x128xf32> to vector<12x128xf32>
    %5 = arith.addf %2, %4 : vector<12x128xf32>
    %6 = math.sin %5 : vector<12x128xf32>
    %c0_5 = arith.constant 0 : index
    %c0_6 = arith.constant 0 : index
    %7 = vector.load %arg1[%c0_5, %c0_6] : memref<12x128xf32, #tpu.memory_space<vmem>>, vector<12x128xf32>
    %c0_7 = arith.constant 0 : index
    %c0_8 = arith.constant 0 : index
    %8 = vector.load %arg5[%c0_7, %c0_8] : memref<128x128xf32, #tpu.memory_space<vmem>>, vector<128x128xf32>
    %cst_9 = arith.constant dense<0.000000e+00> : vector<12x128xf32>
    %9 = tpu.matmul %7, %8, %cst_9 {dimension_numbers = #tpu.dot_dimension_numbers<[1], [0], [0], [1], [0, 0, 1, 1], [], []>} : vector<12x128xf32>, vector<128x128xf32>, vector<12x128xf32> -> vector<12x128xf32>
    %c0_10 = arith.constant 0 : index
    %c0_11 = arith.constant 0 : index
    %10 = vector.load %arg6[%c0_10, %c0_11] : memref<128x128xf32, #tpu.memory_space<vmem>>, vector<128x128xf32>
    %cst_12 = arith.constant dense<0.000000e+00> : vector<12x128xf32>
    %11 = tpu.matmul %6, %10, %cst_12 {dimension_numbers = #tpu.dot_dimension_numbers<[1], [0], [0], [1], [0, 0, 1, 1], [], []>} : vector<12x128xf32>, vector<128x128xf32>, vector<12x128xf32> -> vector<12x128xf32>
    %12 = arith.addf %9, %11 : vector<12x128xf32>
    %c0_13 = arith.constant 0 : index
    %c0_14 = arith.constant 0 : index
    %13 = vector.load %arg7[%c0_13, %c0_14] : memref<1x128xf32, #tpu.memory_space<vmem>>, vector<1x128xf32>
    %14 = vector.broadcast %13 : vector<1x128xf32> to vector<12x128xf32>
    %15 = arith.addf %12, %14 : vector<12x128xf32>
    %c0_15 = arith.constant 0 : index
    %c0_16 = arith.constant 0 : index
    %16 = vector.load %arg8[%c0_15, %c0_16] : memref<12x128xf32, #tpu.memory_space<vmem>>, vector<12x128xf32>
    tpu.vector_store %arg8[%c0_15, %c0_16], %15 {strides = array<i32>} : memref<12x128xf32, #tpu.memory_space<vmem>>, vector<12x128xf32>,
    return
  }
  func.func @transform_0(%arg0: i32) -> (i32, i32) {
    %c0_i32 = arith.constant 0 : i32
    %c0_i32_0 = arith.constant 0 : i32
    return %arg0, %c0_i32 : i32, i32
  }
  func.func @transform_1(%arg0: i32) -> (i32, i32) {
    %c0_i32 = arith.constant 0 : i32
    %c0_i32_0 = arith.constant 0 : i32
    return %arg0, %c0_i32 : i32, i32
  }
  func.func @transform_2(%arg0: i32) -> (i32, i32) {
    %c0_i32 = arith.constant 0 : i32
    %c0_i32_0 = arith.constant 0 : i32
    %c0_i32_1 = arith.constant 0 : i32
    return %c0_i32, %c0_i32_0 : i32, i32
  }
  func.func @transform_3(%arg0: i32) -> (i32, i32) {
    %c0_i32 = arith.constant 0 : i32
    %c0_i32_0 = arith.constant 0 : i32
    %c0_i32_1 = arith.constant 0 : i32
    return %c0_i32, %c0_i32_0 : i32, i32
  }
  func.func @transform_4(%arg0: i32) -> (i32, i32) {
    %c0_i32 = arith.constant 0 : i32
    %c0_i32_0 = arith.constant 0 : i32
    %c0_i32_1 = arith.constant 0 : i32
    return %c0_i32, %c0_i32_0 : i32, i32
  }
  func.func @transform_5(%arg0: i32) -> (i32, i32) {
    %c0_i32 = arith.constant 0 : i32
    %c0_i32_0 = arith.constant 0 : i32
    %c0_i32_1 = arith.constant 0 : i32
    return %c0_i32, %c0_i32_0 : i32, i32
  }
  func.func @transform_6(%arg0: i32) -> (i32, i32) {
    %c0_i32 = arith.constant 0 : i32
    %c0_i32_0 = arith.constant 0 : i32
    %c0_i32_1 = arith.constant 0 : i32
    return %c0_i32, %c0_i32_0 : i32, i32
  }
  func.func @transform_7(%arg0: i32) -> (i32, i32) {
    %c0_i32 = arith.constant 0 : i32
    %c0_i32_0 = arith.constant 0 : i32
    return %arg0, %c0_i32 : i32, i32
  }
}

</mosaic_0001>

<llo_original>
// kernel: tpu_custom_call.1
$region0: #{tpu_custom_call.1}
  #allocation0 [shape = 'u32[]', space=smem, size = 0x4, offset = 0x4, fixed_abs, tag = 'smem constant byte address 0x4 - core index']
  #allocation1 [shape = 'u32[72,128]{1,0:T(1,128)}', space=vmem, size = 0x9000, scoped, tag = 'internal scratch']
  %s0 = inlined_call_operand.vmem [shape: f32[12,128], index: 0, kind: input, shape index: {}]
  %s1 = inlined_call_operand.vmem [shape: f32[12,4], index: 1, kind: input, shape index: {}]
  %s2 = inlined_call_operand.vmem [shape: f32[4,128], index: 2, kind: input, shape index: {}]
  %s3 = inlined_call_operand.vmem [shape: f32[1,128], index: 3, kind: input, shape index: {}]
  %s4 = inlined_call_operand.hbm [shape: f32[128,128], index: 4, kind: input, shape index: {}]
  %s5 = inlined_call_operand.hbm [shape: f32[128,128], index: 5, kind: input, shape index: {}]
  %s6 = inlined_call_operand.vmem [shape: f32[1,128], index: 6, kind: input, shape index: {}]
  %s7 = inlined_call_operand.hbm [shape: f32[12,128], index: 7, kind: output, shape index: {}]
  %s8 = sld [smem:[#allocation0]]
  $region46: #{tpu_custom_call.1} parent=0
    _
  %s10 = ssub.s32 1, %s8
  %s11 = scalar_select 0, %s10, %s8
  $region1: #{tpu_custom_call.1} parent=0
    #allocation2 [shape = 'u8[65536]{0}', space=vmem, size = 0x10000, scoped, tag = 'input window, operand 4, single buffered']
    #allocation3 [shape = 's32[1]{0}', space=sflag, size = 0x4, scoped, tag = 'scoped memory for tpu_custom_call.1']
    #allocation4 [shape = 's32[1]{0}', space=sflag, size = 0x4, scoped, tag = 'scoped memory for tpu_custom_call.1']
    #allocation5 [shape = 'u8[65536]{0}', space=vmem, size = 0x10000, scoped, tag = 'input window, operand 5, single buffered']
    #allocation6 [shape = 's32[1]{0}', space=sflag, size = 0x4, scoped, tag = 'scoped memory for tpu_custom_call.1']
    #allocation7 [shape = 'u8[8192]{0}', space=vmem, size = 0x2000, scoped, tag = 'output window, operand 0, single buffered']
    %12 = vsyncpa [#allocation3], 0
    %13 = vsyncpa [#allocation6], 0
    %14 = vsyncpa [#allocation4], 0
    // Predicated region
    $region2: #{tpu_custom_call.1} parent=1 // pred_check
      _
    $region3: #{tpu_custom_call.1} parent=1 // pred_check_branch
      %16 = sbr.rel (0) target = $region5
    $region4: #{tpu_custom_call.1} parent=1 // pred_region
      _
    $region5: #{tpu_custom_call.1} parent=1 // pred_fallthru
      _
    // Predicated region
    $region6: #{tpu_custom_call.1} parent=1 // pred_check
      _
    $region7: #{tpu_custom_call.1} parent=1 // pred_check_branch
      %18 = sbr.rel (0) target = $region9
    $region8: #{tpu_custom_call.1} parent=1 // pred_region
      _
    $region9: #{tpu_custom_call.1} parent=1 // pred_fallthru
      _
    // Predicated region
    $region10: #{tpu_custom_call.1} parent=1 // pred_check
      _
    $region11: #{tpu_custom_call.1} parent=1 // pred_check_branch
      %20 = sbr.rel (0) target = $region13
    $region12: #{tpu_custom_call.1} parent=1 // pred_region
      _
    $region13: #{tpu_custom_call.1} parent=1 // pred_fallthru
      _
    // Predicated region
    $region14: #{tpu_custom_call.1} parent=1 // pred_check
      _
    $region15: #{tpu_custom_call.1} parent=1 // pred_check_branch
      %22 = sbr.rel (0) target = $region17
    $region16: #{tpu_custom_call.1} parent=1 // pred_region
      _
    $region17: #{tpu_custom_call.1} parent=1 // pred_fallthru
      _
    // Predicated region
    $region18: #{tpu_custom_call.1} parent=1 // pred_check
      _
    $region19: #{tpu_custom_call.1} parent=1 // pred_check_branch
      %24 = sbr.rel (0) target = $region21
    $region20: #{tpu_custom_call.1} parent=1 // pred_region
      %26 = vsyncadd [#allocation3], 0
      %s27 = sshll.u32 %s4, 4
      %s28 = int_to_ptr.hbm [resolvable:$true] %s27
      %s29 = sshll.u32 [#allocation2], 4
      %s30 = int_to_ptr.vmem [resolvable:$true] %s29
      %35 = dma.hbm_to_vmem [thread:$0]  %s28, 2048, %s30, [#allocation3], 128, 128, 8
    $region21: #{tpu_custom_call.1} parent=1 // pred_fallthru
      _
    // Predicated region
    $region22: #{tpu_custom_call.1} parent=1 // pred_check
      _
    $region23: #{tpu_custom_call.1} parent=1 // pred_check_branch
      %37 = sbr.rel (0) target = $region25
    $region24: #{tpu_custom_call.1} parent=1 // pred_region
      %39 = vsyncadd [#allocation6], 0
      %s40 = sshll.u32 %s5, 4
      %s41 = int_to_ptr.hbm [resolvable:$true] %s40
      %s42 = sshll.u32 [#allocation5], 4
      %s43 = int_to_ptr.vmem [resolvable:$true] %s42
      %48 = dma.hbm_to_vmem [thread:$0]  %s41, 2048, %s43, [#allocation6], 128, 128, 8
    $region25: #{tpu_custom_call.1} parent=1 // pred_fallthru
      _
    // Predicated region
    $region26: #{tpu_custom_call.1} parent=1 // pred_check
      _
    $region27: #{tpu_custom_call.1} parent=1 // pred_check_branch
      %50 = sbr.rel (0) target = $region29
    $region28: #{tpu_custom_call.1} parent=1 // pred_region
      _
    $region29: #{tpu_custom_call.1} parent=1 // pred_fallthru
      _
    // Predicated region
    $region30: #{tpu_custom_call.1} parent=1 // pred_check
      _
    $region31: #{tpu_custom_call.1} parent=1 // pred_check_branch
      %52 = sbr.rel (0) target = $region33
    $region32: #{tpu_custom_call.1} parent=1 // pred_region
      %54 = dma.done [#allocation3], 2048
    $region33: #{tpu_custom_call.1} parent=1 // pred_fallthru
      _
    // Predicated region
    $region34: #{tpu_custom_call.1} parent=1 // pred_check
      _
    $region35: #{tpu_custom_call.1} parent=1 // pred_check_branch
      %56 = sbr.rel (0) target = $region37
    $region36: #{tpu_custom_call.1} parent=1 // pred_region
      %58 = dma.done [#allocation6], 2048
    $region37: #{tpu_custom_call.1} parent=1 // pred_fallthru
      _
    %v59 = vld [vmem:[%s1] sm:$0xff]
    %v60 = vld [vmem:[%s1 + $0x8] sm:$0xf]
    %v61 = vld [vmem:[%s2] sm:$0xf]
    %v62 = vld [vmem:[%s3] sm:$0x1]
    %v64 = vperm.slane %v62, 0
    %vm66 = vcmask 31744
    %v68 = vsel %vm66, %v59, 0
    %v71 = vsel %vm66, %v60, 0
    %vm73 = vcmask 1043456
    %v75 = vsel %vm73, %v61, 0
    %77 = vmatpush.msra.mxu0 0.0
    %78 = vmatpush.msra.mxu0 0.0
    %79 = vmatpush.msra.mxu0 0.0
    %80 = vmatpush.msra.mxu0 0.0
    %81 = vmatpush.msra.mxu0 0.0
    %82 = vmatpush.msra.mxu0 0.0
    %83 = vmatpush.msra.mxu0 0.0
    %84 = vmatpush.msra.mxu0 0.0
    %85 = vmatpush.msra.mxu0 0.0
    %86 = vmatpush.msra.mxu0 0.0
    %87 = vmatpush.msra.mxu0 0.0
    %88 = vmatpush.msra.mxu0 0.0
    %89 = vmatpush.msra.mxu0 0.0
    %90 = vmatpush.msra.mxu0 0.0
    %91 = vmatpush.msra.mxu0 0.0
    %92 = vmatpush.msra.mxu0 %v75
    %93 = vmatmul.f32.gmra.mxu0 %v68
    %v94 = vpop.f32.mrf.mxu0
    %v95 = vadd.f32 %v64, %v94
    %96 = vmatmul.f32.gmra.mxu0 %v71
    %v97 = vpop.f32.mrf.mxu0
    %v98 = vadd.f32 %v64, %v97
    %99 = vdwg.mxu0
    %v100 = vand.u32 2147483647, %v95
    %vm101 = vcmp.le.f32.partialorder %v100, 0.7853982
    %vm102 = vcmp.lt.s32.totalorder %v95, 0
    %v103 = vand.u32 %v95, 2139095040
    %v104 = vshrl.u32 %v103, 23
    %v105 = vsub.s32 %v104, 127
    %v106 = vand.u32 2147483647, %v95
    %v107 = vand.u32 %v106, 8388607
    %v108 = vor.u32 %v107, 8388608
    %v109 = vsub.s32 0, %v108
    %v110 = vadd.s32 %v105, 1
    %vm111 = vcmp.gt.s32.totalorder %v110, 0
    %v112 = vsel %vm111, %v110, 0
    %v113 = vshrl.u32 %v112, 5
    %v114 = vand.u32 %v112, 31
    %v115 = vsub.s32 32, %v114
    %v116 = vshrl.u32 683565275, %v115
    %v117 = vshll.u32 683565275, %v114
    %v118 = vshrl.u32 2475754826, %v115
    %v119 = vor.u32 %v117, %v118
    %v120 = vshll.u32 2475754826, %v114
    %v121 = vshrl.u32 2131351028, %v115
    %v122 = vor.u32 %v120, %v121
    %v123 = vshll.u32 2131351028, %v114
    %v124 = vshrl.u32 2102212464, %v115
    %v125 = vor.u32 %v123, %v124
    %v126 = vshll.u32 2102212464, %v114
    %v127 = vshrl.u32 920167782, %v115
    %v128 = vor.u32 %v126, %v127
    %v129 = vshll.u32 920167782, %v114
    %v130 = vshrl.u32 1326507024, %v115
    %v131 = vor.u32 %v129, %v130
    %vm132 = vcmp.lt.s32.totalorder %v113, 1
    %vm133 = vcmp.lt.s32.totalorder %v113, 2
    %vm134 = vcmp.lt.s32.totalorder %v113, 3
    %vm135 = vcmp.lt.s32.totalorder %v113, 4
    %v136 = vsel %vm132, %v116, %v119
    %v137 = vsel %vm135, %v125, 2102212464
    %v138 = vsel %vm134, %v122, %v137
    %v139 = vsel %vm133, %v136, %v138
    %v140 = vsel %vm132, %v119, %v122
    %v141 = vsel %vm135, %v128, 920167782
    %v142 = vsel %vm134, %v125, %v141
    %v143 = vsel %vm133, %v140, %v142
    %v144 = vsel %vm132, %v122, %v125
    %v145 = vsel %vm135, %v131, 1326507024
    %v146 = vsel %vm134, %v128, %v145
    %v147 = vsel %vm133, %v144, %v146
    %v148 = vshll.u32 %v108, 8
    %v149 = vand.u32 %v148, 65535
    %v150 = vshrl.u32 %v148, 16
    %v151 = vand.u32 %v147, 65535
    %v152 = vshrl.u32 %v147, 16
    %v153 = vmul.u32 %v149, %v151
    %v154 = vmul.u32 %v149, %v152
    %v155 = vmul.u32 %v150, %v151
    %v156 = vmul.u32 %v150, %v152
    %v157 = vshll.u32 %v154, 16
    %v158 = vshrl.u32 %v154, 16
    %v159 = vshll.u32 %v155, 16
    %v160 = vshrl.u32 %v155, 16
    %vm161 = vc.u32 %v153, %v157
    %v162 = vsel %vm161, 1, 0
    %v163 = vadd.s32 %v153, %v157
    %v164 = vadd.s32 %v156, %v162
    %vm165 = vc.u32 %v163, %v159
    %v166 = vsel %vm165, 1, 0
    %v167 = vadd.s32 %v163, %v159
    %v168 = vadd.s32 %v164, %v166
    %v169 = vadd.s32 %v168, %v158
    %v170 = vadd.s32 %v169, %v160
    %v171 = vand.u32 %v148, 65535
    %v172 = vshrl.u32 %v148, 16
    %v173 = vand.u32 %v143, 65535
    %v174 = vshrl.u32 %v143, 16
    %v175 = vmul.u32 %v171, %v173
    %v176 = vmul.u32 %v171, %v174
    %v177 = vmul.u32 %v172, %v173
    %v178 = vmul.u32 %v172, %v174
    %v179 = vshll.u32 %v176, 16
    %v180 = vshrl.u32 %v176, 16
    %v181 = vshll.u32 %v177, 16
    %v182 = vshrl.u32 %v177, 16
    %vm183 = vc.u32 %v175, %v179
    %v184 = vsel %vm183, 1, 0
    %v185 = vadd.s32 %v175, %v179
    %v186 = vadd.s32 %v178, %v184
    %vm187 = vc.u32 %v185, %v181
    %v188 = vsel %vm187, 1, 0
    %v189 = vadd.s32 %v185, %v181
    %v190 = vadd.s32 %v186, %v188
    %v191 = vadd.s32 %v190, %v180
    %v192 = vadd.s32 %v191, %v182
    %v193 = vmul.u32 %v148, %v139
    %v194 = vadd.s32 %v170, %v189
    %vm195 = vc.u32 %v170, %v189
    %v196 = vadd.s32 %v192, 1
    %v197 = vsel %vm195, %v196, %v192
    %v198 = vadd.s32 %v193, %v197
    %v199 = vadd.s32 %v198, 536870912
    %v200 = vshrl.u32 %v199, 30
    %v201 = vshll.u32 %v200, 30
    %v202 = vsub.s32 %v198, %v201
    %vm203 = vcmp.lt.s32.totalorder %v202, 0
    %v204 = vsub.s32 0, %v202
    %v205 = vsel %vm203, %v204, %v202
    %v206 = vclz %v205
    %v207 = vsub.s32 %v206, 2
    %vm208 = vcmp.gt.s32.totalorder 0, %v207
    %v209 = vsel %vm208, 0, %v207
    %v210 = vsub.s32 32, %v209
    %v211 = vshll.u32 %v202, %v209
    %v212 = vshrl.u32 %v194, %v210
    %v213 = vor.u32 %v211, %v212
    %v214 = vsub.s32 4294967266, %v209
    %v215 = vadd.s32 %v214, 127
    %v216 = vshll.u32 %v215, 23
    %v217 = vor.u32 4788187, %v216
    %v218 = vand.u32 2147483647, %v217
    %v220 = vcvt.s32.f32 %v213
    %v221 = vmul.f32 %v220, %v218
    %v222 = vxor.u32 %v221, 2147483648
    %v223 = vsel %vm102, %v222, %v221
    %v224 = vsub.s32 4, %v200
    %v225 = vsel %vm102, %v224, %v200
    %v226 = vsel %vm101, %v95, %v223
    %v227 = vsel %vm101, 0, %v225
    %v228 = vmul.f32 %v226, %v226
    %v229 = vmul.f32 %v228, -0.001358992
    %v230 = vadd.f32 %v229, 0.041655596
    %v231 = vmul.f32 %v228, %v230
    %v232 = vadd.f32 %v231, -0.4999988
    %v233 = vmul.f32 %v228, %v232
    %v234 = vadd.f32 1.0, %v233
    %v235 = vmul.f32 %v226, %v226
    %v236 = vmul.f32 %v235, -0.00019511016
    %v237 = vadd.f32 %v236, 0.008332121
    %v238 = vmul.f32 %v235, %v237
    %v239 = vadd.f32 %v238, -0.16666654
    %v240 = vmul.f32 %v235, %v239
    %v241 = vadd.f32 %v240, 1.0
    %v242 = vmul.f32 %v241, %v226
    %vm243 = vweird.f32 %v95
    %v244 = vadd.s32 %v227, 3
    %v245 = vand.u32 %v244, 3
    %vm246 = vcmp.lt.s32.totalorder %v245, 2
    %vm247 = vcmp.eq.s32.totalorder %v245, 0
    %v248 = vxor.u32 %v242, 2147483648
    %v249 = vsel %vm247, %v234, %v248
    %vm250 = vcmp.eq.s32.totalorder %v245, 2
    %v251 = vxor.u32 %v234, 2147483648
    %v252 = vsel %vm250, %v251, %v242
    %v253 = vsel %vm246, %v249, %v252
    %v254 = vsel %vm243, nan, %v253
    %v255 = vand.u32 2147483647, %v98
    %vm256 = vcmp.le.f32.partialorder %v255, 0.7853982
    %vm257 = vcmp.lt.s32.totalorder %v98, 0
    %v258 = vand.u32 %v98, 2139095040
    %v259 = vshrl.u32 %v258, 23
    %v260 = vsub.s32 %v259, 127
    %v261 = vand.u32 2147483647, %v98
    %v262 = vand.u32 %v261, 8388607
    %v263 = vor.u32 %v262, 8388608
    %v264 = vsub.s32 0, %v263
    %v265 = vadd.s32 %v260, 1
    %vm266 = vcmp.gt.s32.totalorder %v265, 0
    %v267 = vsel %vm266, %v265, 0
    %v268 = vshrl.u32 %v267, 5
    %v269 = vand.u32 %v267, 31
    %v270 = vsub.s32 32, %v269
    %v271 = vshrl.u32 683565275, %v270
    %v272 = vshll.u32 683565275, %v269
    %v273 = vshrl.u32 2475754826, %v270
    %v274 = vor.u32 %v272, %v273
    %v275 = vshll.u32 2475754826, %v269
    %v276 = vshrl.u32 2131351028, %v270
    %v277 = vor.u32 %v275, %v276
    %v278 = vshll.u32 2131351028, %v269
    %v279 = vshrl.u32 2102212464, %v270
    %v280 = vor.u32 %v278, %v279
    %v281 = vshll.u32 2102212464, %v269
    %v282 = vshrl.u32 920167782, %v270
    %v283 = vor.u32 %v281, %v282
    %v284 = vshll.u32 920167782, %v269
    %v285 = vshrl.u32 1326507024, %v270
    %v286 = vor.u32 %v284, %v285
    %vm287 = vcmp.lt.s32.totalorder %v268, 1
    %vm288 = vcmp.lt.s32.totalorder %v268, 2
    %vm289 = vcmp.lt.s32.totalorder %v268, 3
    %vm290 = vcmp.lt.s32.totalorder %v268, 4
    %v291 = vsel %vm287, %v271, %v274
    %v292 = vsel %vm290, %v280, 2102212464
    %v293 = vsel %vm289, %v277, %v292
    %v294 = vsel %vm288, %v291, %v293
    %v295 = vsel %vm287, %v274, %v277
    %v296 = vsel %vm290, %v283, 920167782
    %v297 = vsel %vm289, %v280, %v296
    %v298 = vsel %vm288, %v295, %v297
    %v299 = vsel %vm287, %v277, %v280
    %v300 = vsel %vm290, %v286, 1326507024
    %v301 = vsel %vm289, %v283, %v300
    %v302 = vsel %vm288, %v299, %v301
    %v303 = vshll.u32 %v263, 8
    %v304 = vand.u32 %v303, 65535
    %v305 = vshrl.u32 %v303, 16
    %v306 = vand.u32 %v302, 65535
    %v307 = vshrl.u32 %v302, 16
    %v308 = vmul.u32 %v304, %v306
    %v309 = vmul.u32 %v304, %v307
    %v310 = vmul.u32 %v305, %v306
    %v311 = vmul.u32 %v305, %v307
    %v312 = vshll.u32 %v309, 16
    %v313 = vshrl.u32 %v309, 16
    %v314 = vshll.u32 %v310, 16
    %v315 = vshrl.u32 %v310, 16
    %vm316 = vc.u32 %v308, %v312
    %v317 = vsel %vm316, 1, 0
    %v318 = vadd.s32 %v308, %v312
    %v319 = vadd.s32 %v311, %v317
    %vm320 = vc.u32 %v318, %v314
    %v321 = vsel %vm320, 1, 0
    %v322 = vadd.s32 %v318, %v314
    %v323 = vadd.s32 %v319, %v321
    %v324 = vadd.s32 %v323, %v313
    %v325 = vadd.s32 %v324, %v315
    %v326 = vand.u32 %v303, 65535
    %v327 = vshrl.u32 %v303, 16
    %v328 = vand.u32 %v298, 65535
    %v329 = vshrl.u32 %v298, 16
    %v330 = vmul.u32 %v326, %v328
    %v331 = vmul.u32 %v326, %v329
    %v332 = vmul.u32 %v327, %v328
    %v333 = vmul.u32 %v327, %v329
    %v334 = vshll.u32 %v331, 16
    %v335 = vshrl.u32 %v331, 16
    %v336 = vshll.u32 %v332, 16
    %v337 = vshrl.u32 %v332, 16
    %vm338 = vc.u32 %v330, %v334
    %v339 = vsel %vm338, 1, 0
    %v340 = vadd.s32 %v330, %v334
    %v341 = vadd.s32 %v333, %v339
    %vm342 = vc.u32 %v340, %v336
    %v343 = vsel %vm342, 1, 0
    %v344 = vadd.s32 %v340, %v336
    %v345 = vadd.s32 %v341, %v343
    %v346 = vadd.s32 %v345, %v335
    %v347 = vadd.s32 %v346, %v337
    %v348 = vmul.u32 %v303, %v294
    %v349 = vadd.s32 %v325, %v344
    %vm350 = vc.u32 %v325, %v344
    %v351 = vadd.s32 %v347, 1
    %v352 = vsel %vm350, %v351, %v347
    %v353 = vadd.s32 %v348, %v352
    %v354 = vadd.s32 %v353, 536870912
    %v355 = vshrl.u32 %v354, 30
    %v356 = vshll.u32 %v355, 30
    %v357 = vsub.s32 %v353, %v356
    %vm358 = vcmp.lt.s32.totalorder %v357, 0
    %v359 = vsub.s32 0, %v357
    %v360 = vsel %vm358, %v359, %v357
    %v361 = vclz %v360
    %v362 = vsub.s32 %v361, 2
    %vm363 = vcmp.gt.s32.totalorder 0, %v362
    %v364 = vsel %vm363, 0, %v362
    %v365 = vsub.s32 32, %v364
    %v366 = vshll.u32 %v357, %v364
    %v367 = vshrl.u32 %v349, %v365
    %v368 = vor.u32 %v366, %v367
    %v369 = vsub.s32 4294967266, %v364
    %v370 = vadd.s32 %v369, 127
    %v371 = vshll.u32 %v370, 23
    %v372 = vor.u32 4788187, %v371
    %v373 = vand.u32 2147483647, %v372
    %v375 = vcvt.s32.f32 %v368
    %v376 = vmul.f32 %v375, %v373
    %v377 = vxor.u32 %v376, 2147483648
    %v378 = vsel %vm257, %v377, %v376
    %v379 = vsub.s32 4, %v355
    %v380 = vsel %vm257, %v379, %v355
    %v381 = vsel %vm256, %v98, %v378
    %v382 = vsel %vm256, 0, %v380
    %v383 = vmul.f32 %v381, %v381
    %v384 = vmul.f32 %v383, -0.001358992
    %v385 = vadd.f32 %v384, 0.041655596
    %v386 = vmul.f32 %v383, %v385
    %v387 = vadd.f32 %v386, -0.4999988
    %v388 = vmul.f32 %v383, %v387
    %v389 = vadd.f32 1.0, %v388
    %v390 = vmul.f32 %v381, %v381
    %v391 = vmul.f32 %v390, -0.00019511016
    %v392 = vadd.f32 %v391, 0.008332121
    %v393 = vmul.f32 %v390, %v392
    %v394 = vadd.f32 %v393, -0.16666654
    %v395 = vmul.f32 %v390, %v394
    %v396 = vadd.f32 %v395, 1.0
    %v397 = vmul.f32 %v396, %v381
    %vm398 = vweird.f32 %v98
    %v399 = vadd.s32 %v382, 3
    %v400 = vand.u32 %v399, 3
    %vm401 = vcmp.lt.s32.totalorder %v400, 2
    %vm402 = vcmp.eq.s32.totalorder %v400, 0
    %v403 = vxor.u32 %v397, 2147483648
    %v404 = vsel %vm402, %v389, %v403
    %vm405 = vcmp.eq.s32.totalorder %v400, 2
    %v406 = vxor.u32 %v389, 2147483648
    %v407 = vsel %vm405, %v406, %v397
    %v408 = vsel %vm401, %v404, %v407
    %v409 = vsel %vm398, nan, %v408
    %v410 = vld [vmem:[%s0] sm:$0xff]
    %v411 = vld [vmem:[%s0 + $0x8] sm:$0xf]
    %v412 = vld [vmem:[#allocation2] sm:$0xff]
    %v413 = vld [vmem:[#allocation2 + $0x8] sm:$0xff]
    %v414 = vld [vmem:[#allocation2 + $0x10] sm:$0xff]
    %v415 = vld [vmem:[#allocation2 + $0x18] sm:$0xff]
    %v416 = vld [vmem:[#allocation2 + $0x20] sm:$0xff]
    %v417 = vld [vmem:[#allocation2 + $0x28] sm:$0xff]
    %v418 = vld [vmem:[#allocation2 + $0x30] sm:$0xff]
    %v419 = vld [vmem:[#allocation2 + $0x38] sm:$0xff]
    %v420 = vld [vmem:[#allocation2 + $0x40] sm:$0xff]
    %v421 = vld [vmem:[#allocation2 + $0x48] sm:$0xff]
    %v422 = vld [vmem:[#allocation2 + $0x50] sm:$0xff]
    %v423 = vld [vmem:[#allocation2 + $0x58] sm:$0xff]
    %v424 = vld [vmem:[#allocation2 + $0x60] sm:$0xff]
    %v425 = vld [vmem:[#allocation2 + $0x68] sm:$0xff]
    %v426 = vld [vmem:[#allocation2 + $0x70] sm:$0xff]
    %v427 = vld [vmem:[#allocation2 + $0x78] sm:$0xff]
    %v428 = vld [vmem:[#allocation5] sm:$0xff]
    %v429 = vld [vmem:[#allocation5 + $0x8] sm:$0xff]
    %v430 = vld [vmem:[#allocation5 + $0x10] sm:$0xff]
    %v431 = vld [vmem:[#allocation5 + $0x18] sm:$0xff]
    %v432 = vld [vmem:[#allocation5 + $0x20] sm:$0xff]
    %v433 = vld [vmem:[#allocation5 + $0x28] sm:$0xff]
    %v434 = vld [vmem:[#allocation5 + $0x30] sm:$0xff]
    %v435 = vld [vmem:[#allocation5 + $0x38] sm:$0xff]
    %v436 = vld [vmem:[#allocation5 + $0x40] sm:$0xff]
    %v437 = vld [vmem:[#allocation5 + $0x48] sm:$0xff]
    %v438 = vld [vmem:[#allocation5 + $0x50] sm:$0xff]
    %v439 = vld [vmem:[#allocation5 + $0x58] sm:$0xff]
    %v440 = vld [vmem:[#allocation5 + $0x60] sm:$0xff]
    %v441 = vld [vmem:[#allocation5 + $0x68] sm:$0xff]
    %v442 = vld [vmem:[#allocation5 + $0x70] sm:$0xff]
    %v443 = vld [vmem:[#allocation5 + $0x78] sm:$0xff]
    %444 = vmatpush.msra.mxu0 %v443
    %445 = vmatpush.msra.mxu0 %v442
    %446 = vmatpush.msra.mxu0 %v441
    %447 = vmatpush.msra.mxu0 %v440
    %448 = vmatpush.msra.mxu0 %v439
    %449 = vmatpush.msra.mxu0 %v438
    %450 = vmatpush.msra.mxu0 %v437
    %451 = vmatpush.msra.mxu0 %v436
    %452 = vmatpush.msra.mxu0 %v435
    %453 = vmatpush.msra.mxu0 %v434
    %454 = vmatpush.msra.mxu0 %v433
    %455 = vmatpush.msra.mxu0 %v432
    %456 = vmatpush.msra.mxu0 %v431
    %457 = vmatpush.msra.mxu0 %v430
    %458 = vmatpush.msra.mxu0 %v429
    %459 = vmatpush.msra.mxu0 %v428
    %460 = vmatmul.f32.gmra.mxu0 %v254
    %v461 = vpop.f32.mrf.mxu0
    %v462 = vadd.f32 0.0, %v461
    %463 = vmatmul.f32.gmra.mxu0 %v409
    %v464 = vpop.f32.mrf.mxu0
    %v465 = vadd.f32 0.0, %v464
    %466 = vdwg.mxu0
    %467 = vmatpush.msra.mxu0 %v427
    %468 = vmatpush.msra.mxu0 %v426
    %469 = vmatpush.msra.mxu0 %v425
    %470 = vmatpush.msra.mxu0 %v424
    %471 = vmatpush.msra.mxu0 %v423
    %472 = vmatpush.msra.mxu0 %v422
    %473 = vmatpush.msra.mxu0 %v421
    %474 = vmatpush.msra.mxu0 %v420
    %475 = vmatpush.msra.mxu0 %v419
    %476 = vmatpush.msra.mxu0 %v418
    %477 = vmatpush.msra.mxu0 %v417
    %478 = vmatpush.msra.mxu0 %v416
    %479 = vmatpush.msra.mxu0 %v415
    %480 = vmatpush.msra.mxu0 %v414
    %481 = vmatpush.msra.mxu0 %v413
    %482 = vmatpush.msra.mxu0 %v412
    %483 = vmatmul.f32.gmra.mxu0 %v410
    %v484 = vpop.f32.mrf.mxu0
    %v485 = vadd.f32 %v462, %v484
    %486 = vmatmul.f32.gmra.mxu0 %v411
    %v487 = vpop.f32.mrf.mxu0
    %v488 = vadd.f32 %v465, %v487
    %489 = vdwg.mxu0
    %v490 = vld [vmem:[%s6] sm:$0x1]
    %v492 = vperm.slane %v490, 0
    %v494 = vadd.f32 %v485, %v492
    %v495 = vadd.f32 %v488, %v492
    %496 = vst [vmem:[#allocation7] sm:$0xff] %v494
    %497 = vst [vmem:[#allocation7 + $0x8] sm:$0xf] %v495
    // Predicated region
    $region38: #{tpu_custom_call.1} parent=1 // pred_check
      _
    $region39: #{tpu_custom_call.1} parent=1 // pred_check_branch
      %499 = sbr.rel (0) target = $region41
    $region40: #{tpu_custom_call.1} parent=1 // pred_region
      %501 = vsyncadd [#allocation4], 0
      %s502 = sshll.u32 [#allocation7], 4
      %s503 = int_to_ptr.vmem [resolvable:$true] %s502
      %s504 = sshll.u32 %s7, 4
      %s505 = int_to_ptr.hbm [resolvable:$true] %s504
      %510 = dma.vmem_to_hbm [thread:$0]  %s503, 256, %s505, [#allocation4], 128, 128, 8
    $region41: #{tpu_custom_call.1} parent=1 // pred_fallthru
      _
    // Predicated region
    $region42: #{tpu_custom_call.1} parent=1 // pred_check
      _
    $region43: #{tpu_custom_call.1} parent=1 // pred_check_branch
      %512 = sbr.rel (0) target = $region45
    $region44: #{tpu_custom_call.1} parent=1 // pred_region
      %514 = dma.done [#allocation4], 256
    $region45: #{tpu_custom_call.1} parent=1 // pred_fallthru
      _
    %515 = vsyncpa [#allocation3], 1
    %516 = vsyncpa [#allocation6], 1
    %517 = vsyncpa [#allocation4], 1

</llo_original>
